<compile_context>
chip_gen: v6e
topology: v6e:2x2x1
jax: 0.10.0
libtpu: 0.0.40
codegen_flags: <defaults>
</compile_context>

<pallas_src>
import math
from functools import partial

import jax
import jax.numpy as jnp
import numpy as np
from jax.experimental import pallas as pl
from jax.experimental.pallas import tpu as pltpu

BN_EPS = 1e-5
LOG_10000 = math.log(10000.0)


def _row_tile(rows: int, target: int) -> int:
    """Row-tile size: full extent when small, else a fixed multiple of 8."""
    assert target % 8 == 0
    return rows if rows <= target else target


# ---------------------------------------------------------------------------
# Kernel 1: BatchNorm batch statistics (sum / sum-of-squares per column).
# ---------------------------------------------------------------------------
def _bn_stats_kernel(x_ref, o_ref, *, rows_total, tiles_per_core):
    step = pl.program_id(1)

    @pl.when(step == 0)
    def _():
        o_ref[...] = jnp.zeros_like(o_ref)

    tr = x_ref.shape[0]
    # Intended (unwrapped) tile index; rows past rows_total are masked so the
    # tail tile / wrapped extra tiles contribute exactly zero.
    tile = pl.program_id(0) * tiles_per_core + step
    ridx = tile * tr + jax.lax.broadcasted_iota(jnp.int32, (tr, 1), 0)
    x = jnp.where(ridx < rows_total, x_ref[...].astype(jnp.float32), 0.0)

    s = jnp.sum(x, axis=0, keepdims=True)
    s2 = jnp.sum(x * x, axis=0, keepdims=True)
    # Single (2, C) accumulate (no 1-sublane strided partial stores).
    o_ref[...] += jnp.concatenate([s, s2], axis=0)[None]


def _bn_stats(x2d, *, row_tile_target=2048):
    """x2d: (R, C) f32 -> (2, C) f32 = [col sums; col sums of squares]."""
    R, C = x2d.shape
    tr = _row_tile(R, row_tile_target)
    ntiles = int(pl.cdiv(R, tr))
    ncores = min(2, ntiles)                 # megacore split (v7x); 1 otherwise
    per = int(pl.cdiv(ntiles, ncores))      # tiles per core (rectangular grid)

    partials = pl.pallas_call(
        partial(_bn_stats_kernel, rows_total=R, tiles_per_core=per),
        out_shape=jax.ShapeDtypeStruct((ncores, 2, C), jnp.float32),
        grid=(ncores, per),
        in_specs=[
            # Wrap the (at most one) overflow tile back in range; the kernel's
            # row mask zeroes its contribution.
            pl.BlockSpec((tr, C), lambda c, i: ((c * per + i) % ntiles, 0)),
        ],
        out_specs=pl.BlockSpec((1, 2, C), lambda c, i: (c, 0, 0)),
        compiler_params=pltpu.CompilerParams(
            dimension_semantics=("parallel", "arbitrary")),
    )(x2d)
    return partials.sum(axis=0)             # (2, C)


# ---------------------------------------------------------------------------
# Kernel 2: folded (BN-fused) projection + fractional positional encoding.
# ---------------------------------------------------------------------------
def _encoder_kernel(inv_ds_ref, x_ref, w_ref, c_ref, o_ref, *, fold):
    b = pl.program_id(0)
    rt = pl.program_id(1)
    tr = x_ref.shape[1]                     # folded rows in this tile

    # Bias-free projection with BN folded into the block-diagonal weight;
    # bf16 MXU operands, f32 accumulation.
    x = x_ref[0].astype(jnp.bfloat16)                               # (tr, fold*Din)
    y = jnp.dot(x, w_ref[...], preferred_element_type=jnp.float32)  # (tr, cols)

    c = c_ref[...]                                                  # (4, cols) f32
    bias, div, phase, qoff = c[0:1], c[1:2], c[2:3], c[3:4]

    # angle(row r, col = q*Dlat + j) = ((rt*tr + r)*fold + q) * inv_ds * div + phase
    #                                = r * a_col + b_col
    # -> per element just 1 mul + 1 add + 1 sin (cos folded in via +pi/2 phase).
    inv_ds = inv_ds_ref[b]                                          # scalar (SMEM)
    base = (rt * (tr * fold)).astype(jnp.float32)
    a_col = div * (inv_ds * float(fold))                            # (1, cols)
    b_col = (base + qoff) * inv_ds * div + phase                    # (1, cols)
    r = jax.lax.broadcasted_iota(jnp.int32, (tr, 1), 0).astype(jnp.float32)
    pe = jnp.sin(r * a_col + b_col)                                 # (tr, cols)

    o_ref[0] = (y + bias + pe).astype(o_ref.dtype)


# ---------------------------------------------------------------------------
# Wrapper.
# ---------------------------------------------------------------------------
def noop_encoder(data, gamma, beta, w, downscale_factor, *, out_dtype=jnp.float32):
    """NoOpEncoder forward (video branch).

    data: (B, L, Din) f32 (already viewed to (B, -1, input_dim));
    gamma/beta: (Din,) BatchNorm1d affine params; w: (Din, Dlat) projection
    (x @ w); downscale_factor: (B,) f32.  Returns (B, L, Dlat) out_dtype.
    """
    B, L, Din = data.shape
    Dlat = w.shape[1]
    gamma = gamma.reshape(Din).astype(jnp.float32)
    beta = beta.reshape(Din).astype(jnp.float32)
    w = w.astype(jnp.float32)

    # ---- pass 1: global BatchNorm statistics over all B*L rows ----
    # Stats-only lane fold: fold1*Din is a multiple of 128 when achievable
    # (decoupled from the output fold), so the mem-bound stats pass streams
    # lane-dense rows.
    fold1 = math.gcd(128 // math.gcd(Din, 128), B * L)
    x1 = data.reshape((B * L) // fold1, fold1 * Din)    # layout plumbing only
    stats = _bn_stats(x1)
    s = stats[0].reshape(fold1, Din).sum(axis=0)
    s2 = stats[1].reshape(fold1, Din).sum(axis=0)
    n = float(B * L)
    mean = s / n
    var = jnp.maximum(s2 / n - mean * mean, 0.0)        # biased (training mode)

    # ---- fold BN into the projection ----
    scale = gamma * jax.lax.rsqrt(var + BN_EPS)         # (Din,)
    shift = beta - mean * scale                         # (Din,)
    w_eff = scale[:, None] * w                          # (Din, Dlat)
    b_eff = shift @ w                                   # (Dlat,)

    # Output lane fold: minimum fold that reaches 128 output lanes (unmasked
    # stores); kept minimal so the block-diagonal weight stays tiny.
    fold = math.gcd(max(1, 128 // Dlat), L)
    rpb = L // fold                                     # folded rows per batch
    x_fold = data.reshape(B, rpb, fold * Din)           # layout plumbing only

    # Block-diagonal folded weight: one MXU matmul -> lane-dense output tile.
    eye = jnp.eye(fold, dtype=jnp.float32)
    w_blk = jnp.einsum("fg,dk->fdgk", eye, w_eff)
    w_blk = w_blk.reshape(fold * Din, fold * Dlat).astype(jnp.bfloat16)

    # Per-column constants in folded layout (column = q*Dlat + j).
    j = jnp.arange(Dlat)
    div = jnp.exp((2.0 * (j // 2)).astype(jnp.float32) * (-LOG_10000 / Dlat))
    phase = (j % 2).astype(jnp.float32) * (math.pi / 2.0)   # cos == sin(+pi/2)
    consts = jnp.stack(
        [
            jnp.tile(b_eff, fold),                                   # bias
            jnp.tile(div, fold),                                     # div_term
            jnp.tile(phase, fold),                                   # parity phase
            jnp.repeat(jnp.arange(fold, dtype=jnp.float32), Dlat),   # q offset
        ],
        axis=0,
    ).astype(jnp.float32)                               # (4, fold*Dlat)

    inv_ds = (1.0 / downscale_factor.astype(jnp.float32)).reshape(B)

    # ---- pass 2: tiled projection + positional encoding ----
    tr = _row_tile(rpb, 1024)                           # folded rows per tile
    cols_in = fold * Din
    cols_out = fold * Dlat

    out_fold = pl.pallas_call(
        partial(_encoder_kernel, fold=fold),
        out_shape=jax.ShapeDtypeStruct((B, rpb, cols_out), out_dtype),
        grid=(B, int(pl.cdiv(rpb, tr))),                # tail tile handled by Pallas
        in_specs=[
            pl.BlockSpec(memory_space=pltpu.MemorySpace.SMEM),       # inv_ds
            pl.BlockSpec((1, tr, cols_in), lambda b, r: (b, r, 0)),  # x tile
            pl.BlockSpec((cols_in, cols_out), lambda b, r: (0, 0)),  # weight
            pl.BlockSpec((4, cols_out), lambda b, r: (0, 0)),        # consts
        ],
        out_specs=pl.BlockSpec((1, tr, cols_out), lambda b, r: (b, r, 0)),
        compiler_params=pltpu.CompilerParams(
            dimension_semantics=("parallel", "parallel")),
    )(inv_ds, x_fold, w_blk, consts)

    return out_fold.reshape(B, L, Dlat)                 # layout plumbing only


# ---------------------------------------------------------------------------
# Pure-JAX reference (mirrors the PyTorch forward) for a sanity check.
# ---------------------------------------------------------------------------
def _reference(data, gamma, beta, w, ds):
    B, L, Din = data.shape
    Dlat = w.shape[1]
    flat = data.reshape(-1, Din)
    mean = flat.mean(axis=0)
    var = ((flat - mean) ** 2).mean(axis=0)
    xn = (data - mean) * jax.lax.rsqrt(var + BN_EPS)
    xn = xn * gamma.reshape(1, 1, Din) + beta.reshape(1, 1, Din)
    y = jnp.einsum("bld,dk->blk", xn, w)
    pos = jnp.arange(L, dtype=jnp.float32)[None, :] / ds[:, None]          # (B, L)
    div = jnp.exp(jnp.arange(0, Dlat, 2, dtype=jnp.float32) * (-LOG_10000 / Dlat))
    ang = pos[:, :, None] * div[None, None, :]
    pe = jnp.zeros((B, L, Dlat), jnp.float32)
    pe = pe.at[:, :, 0::2].set(jnp.sin(ang))
    pe = pe.at[:, :, 1::2].set(jnp.cos(ang))
    return y + pe


if __name__ == "__main__":
    def run_case(key, B, L, Din, Dlat):
        k1, k2, k3, k4, k5 = jax.random.split(key, 5)
        # L == max_data_length so `data + pe` matches the PyTorch broadcast.
        data = jax.random.normal(k1, (B, L, Din), dtype=jnp.float32)
        # nn.Linear(Din, Dlat, bias=False): weight (Dlat, Din) ~ U(+-1/sqrt(Din))
        bound = 1.0 / math.sqrt(Din)
        w = jax.random.uniform(k2, (Dlat, Din), minval=-bound, maxval=bound,
                               dtype=jnp.float32).T               # (Din, Dlat)
        # BatchNorm1d affine params (randomized to exercise the BN fold).
        gamma = 1.0 + 0.1 * jax.random.normal(k3, (Din,), dtype=jnp.float32)
        beta = 0.1 * jax.random.normal(k4, (Din,), dtype=jnp.float32)
        # Video branch: per-batch framerate ratio (audio branch = ones).
        fr = jax.random.uniform(k5, (B,), minval=0.5, maxval=2.0,
                                dtype=jnp.float32)

        out = noop_encoder(data, gamma, beta, w, fr)
        jax.block_until_ready(out)
        ref = _reference(data, gamma, beta, w, fr)
        np.testing.assert_allclose(np.asarray(out), np.asarray(ref),
                                   atol=1e-1, rtol=5e-2)   # bf16 matmul tolerance
        assert out.shape == (B, L, Dlat) and out.dtype == jnp.float32

    key = jax.random.PRNGKey(0)
    k1, k2 = jax.random.split(key)
    # Small smoke case (single block per batch).
    run_case(k1, B=2, L=8, Din=16, Dlat=32)
    # Larger case: exercises cdiv grids with masked tail tiles in both passes
    # and the 2-core stats split with a wrapped (masked) overflow tile.
    run_case(k2, B=2, L=16500, Din=16, Dlat=32)
    print("KERNEL_OK")
</pallas_src>

<mosaic_0001>
module attributes {stable_mosaic.version = 11 : i64} {
  func.func @_bn_stats_kernel(%arg0: i32, %arg1: i32, %arg2: memref<2x128xf32, #tpu.memory_space<vmem>>, %arg3: memref<1x2x128xf32, #tpu.memory_space<vmem>>) attributes {dimension_semantics = [#tpu.dimension_semantics<parallel>, #tpu.dimension_semantics<arbitrary>], iteration_bounds = array<i64: 1, 1>, scalar_prefetch = 0 : i64, scratch_operands = 0 : i64, tpu.core_type = #tpu.core_type<tc>, window_params = [{transform_indices = @transform_0, window_bounds = array<i64: 2, 128>}, {transform_indices = @transform_1, window_bounds = array<i64: 1, 2, 128>}]} {
    %c0_i32 = arith.constant 0 : i32
    %0 = arith.cmpi eq, %arg1, %c0_i32 : i32
    %1 = arith.extui %0 : i1 to i32
    %c0_i32_0 = arith.constant 0 : i32
    %2 = arith.cmpi ne, %1, %c0_i32_0 : i32
    scf.if %2 {
      %cst_11 = arith.constant 0.000000e+00 : f32
      %26 = vector.broadcast %cst_11 : f32 to vector<1x2x128xf32>
      %c0_12 = arith.constant 0 : index
      %c0_13 = arith.constant 0 : index
      %c0_14 = arith.constant 0 : index
      %27 = vector.load %arg3[%c0_12, %c0_13, %c0_14] : memref<1x2x128xf32, #tpu.memory_space<vmem>>, vector<1x2x128xf32>
      tpu.vector_store %arg3[%c0_12, %c0_13, %c0_14], %26 {strides = array<i32>} : memref<1x2x128xf32, #tpu.memory_space<vmem>>, vector<1x2x128xf32>,
    } else {
    }
    %c1_i32 = arith.constant 1 : i32
    %3 = arith.muli %arg0, %c1_i32 : i32
    %4 = arith.addi %3, %arg1 : i32
    %c2_i32 = arith.constant 2 : i32
    %5 = arith.muli %4, %c2_i32 : i32
    %6 = tpu.iota {dimensions = array<i32: 0>} : vector<2x1xi32>
    %7 = vector.broadcast %5 : i32 to vector<2x1xi32>
    %8 = arith.addi %7, %6 : vector<2x1xi32>
    %c2_i32_1 = arith.constant 2 : i32
    %9 = vector.broadcast %c2_i32_1 : i32 to vector<2x1xi32>
    %10 = arith.cmpi slt, %8, %9 : vector<2x1xi32>
    %c0 = arith.constant 0 : index
    %c0_2 = arith.constant 0 : index
    %11 = vector.load %arg2[%c0, %c0_2] : memref<2x128xf32, #tpu.memory_space<vmem>>, vector<2x128xf32>
    %cst = arith.constant 0.000000e+00 : f32
    %12 = vector.shape_cast %10 : vector<2x1xi1> to vector<2x1xi1>
    %13 = vector.broadcast %12 : vector<2x1xi1> to vector<2x128xi1>
    %14 = vector.broadcast %cst : f32 to vector<2x128xf32>
    %15 = arith.select %13, %11, %14 : vector<2x128xi1>, vector<2x128xf32>
    %cst_3 = arith.constant dense<0.000000e+00> : vector<128xf32>
    %16 = vector.multi_reduction <add>, %15, %cst_3 [0] : vector<2x128xf32> to vector<128xf32>
    %17 = vector.shape_cast %16 : vector<128xf32> to vector<1x128xf32>
    %18 = arith.mulf %15, %15 : vector<2x128xf32>
    %cst_4 = arith.constant dense<0.000000e+00> : vector<128xf32>
    %19 = vector.multi_reduction <add>, %18, %cst_4 [0] : vector<2x128xf32> to vector<128xf32>
    %20 = vector.shape_cast %19 : vector<128xf32> to vector<1x128xf32>
    %c0_5 = arith.constant 0 : index
    %c0_6 = arith.constant 0 : index
    %c0_7 = arith.constant 0 : index
    %21 = vector.load %arg3[%c0_5, %c0_6, %c0_7] : memref<1x2x128xf32, #tpu.memory_space<vmem>>, vector<1x2x128xf32>
    %22 = tpu.concatenate %17, %20 in 0 : vector<1x128xf32>, vector<1x128xf32> -> vector<2x128xf32>
    %23 = vector.shape_cast %22 : vector<2x128xf32> to vector<1x2x128xf32>
    %24 = arith.addf %21, %23 : vector<1x2x128xf32>
    %c0_8 = arith.constant 0 : index
    %c0_9 = arith.constant 0 : index
    %c0_10 = arith.constant 0 : index
    %25 = vector.load %arg3[%c0_8, %c0_9, %c0_10] : memref<1x2x128xf32, #tpu.memory_space<vmem>>, vector<1x2x128xf32>
    tpu.vector_store %arg3[%c0_8, %c0_9, %c0_10], %24 {strides = array<i32>} : memref<1x2x128xf32, #tpu.memory_space<vmem>>, vector<1x2x128xf32>,
    return
  }
  func.func @transform_0(%arg0: i32, %arg1: i32) -> (i32, i32) {
    %c1_i32 = arith.constant 1 : i32
    %0 = arith.muli %arg0, %c1_i32 : i32
    %1 = arith.addi %0, %arg1 : i32
    %c1_i32_0 = arith.constant 1 : i32
    %c0_i32 = arith.constant 0 : i32
    %2 = arith.cmpi eq, %c1_i32_0, %c0_i32 : i32
    %c1_i32_1 = arith.constant 1 : i32
    %3 = arith.select %2, %c1_i32_1, %c1_i32_0 : i32
    %4 = arith.remsi %1, %3 : i32
    %c0_i32_2 = arith.constant 0 : i32
    %5 = arith.cmpi ne, %4, %c0_i32_2 : i32
    %c0_i32_3 = arith.constant 0 : i32
    %6 = arith.cmpi slt, %4, %c0_i32_3 : i32
    %c0_i32_4 = arith.constant 0 : i32
    %7 = arith.cmpi slt, %3, %c0_i32_4 : i32
    %8 = arith.xori %6, %7 : i1
    %9 = arith.andi %8, %5 : i1
    %10 = arith.addi %4, %3 : i32
    %11 = arith.select %9, %10, %4 : i32
    %c0_i32_5 = arith.constant 0 : i32
    %c0_i32_6 = arith.constant 0 : i32
    return %11, %c0_i32_5 : i32, i32
  }
  func.func @transform_1(%arg0: i32, %arg1: i32) -> (i32, i32, i32) {
    %c0_i32 = arith.constant 0 : i32
    %c0_i32_0 = arith.constant 0 : i32
    %c0_i32_1 = arith.constant 0 : i32
    return %arg0, %c0_i32, %c0_i32_0 : i32, i32, i32
  }
}

</mosaic_0001>

<llo_original>
// kernel: tpu_custom_call.1
$region0: #{tpu_custom_call.1}
  #allocation0 [shape = 'u32[]', space=smem, size = 0x4, offset = 0x4, fixed_abs, tag = 'smem constant byte address 0x4 - core index']
  #allocation1 [shape = 'u32[144,128]{1,0:T(1,128)}', space=vmem, size = 0x12000, scoped, tag = 'internal scratch']
  %s0 = inlined_call_operand.hbm [shape: f32[2,128], index: 0, kind: input, shape index: {}]
  %s1 = inlined_call_operand.hbm [shape: f32[1,2,128], index: 1, kind: output, shape index: {}]
  %s2 = sld [smem:[#allocation0]]
  $region22: #{tpu_custom_call.1} parent=0
    _
  %s4 = ssub.s32 1, %s2
  %s5 = scalar_select 0, %s4, %s2
  $region1: #{tpu_custom_call.1} parent=0
    #allocation2 [shape = 'u8[1024]{0}', space=vmem, size = 0x400, scoped, tag = 'input window, operand 0, single buffered']
    #allocation3 [shape = 's32[1]{0}', space=sflag, size = 0x4, scoped, tag = 'scoped memory for tpu_custom_call.1']
    #allocation4 [shape = 's32[1]{0}', space=sflag, size = 0x4, scoped, tag = 'scoped memory for tpu_custom_call.1']
    #allocation5 [shape = 'u8[1024]{0}', space=vmem, size = 0x400, scoped, tag = 'output window, operand 0, single buffered']
    %6 = vsyncpa [#allocation3], 0
    %7 = vsyncpa [#allocation4], 0
    // Predicated region
    $region2: #{tpu_custom_call.1} parent=1 // pred_check
      _
    $region3: #{tpu_custom_call.1} parent=1 // pred_check_branch
      %9 = sbr.rel (0) target = $region5
    $region4: #{tpu_custom_call.1} parent=1 // pred_region
      %s11 = ssub.s32 32, 32
      %12 = vsyncadd [#allocation3], %s11
      %s14 = sshll.u32 [#allocation2], 4
      %s15 = int_to_ptr.vmem [resolvable:$true] %s14
      %17 = dma.hbm_to_vmem [thread:$0]  %s0, 32, %s15, [#allocation3]
    $region5: #{tpu_custom_call.1} parent=1 // pred_fallthru
      _
    // Predicated region
    $region6: #{tpu_custom_call.1} parent=1 // pred_check
      _
    $region7: #{tpu_custom_call.1} parent=1 // pred_check_branch
      %19 = sbr.rel (0) target = $region9
    $region8: #{tpu_custom_call.1} parent=1 // pred_region
      %20 = dma.done [#allocation3], 32
    $region9: #{tpu_custom_call.1} parent=1 // pred_fallthru
      _
    %p21 = scmp.eq.s32.totalorder 0, 0
    // Predicated region
    $region10: #{tpu_custom_call.1} parent=1 // pred_check
      %p22 = pneg %p21
    $region11: #{tpu_custom_call.1} parent=1 // pred_check_branch
      %24 = sbr.rel (%p22) target = $region13
    $region12: #{tpu_custom_call.1} parent=1 // pred_region
      %25 = vst [vmem:[#allocation5] sm:$0x3] 0.0
    $region13: #{tpu_custom_call.1} parent=1 // pred_fallthru
      _
    %s26 = sadd.s32 0, 0
    %s27 = smul.u32 %s26, 2
    %v28 = vlaneseq
    %v29 = vshrl.u32 %v28, 7
    %v30 = vstv %s27
    %v31 = vadd.s32 %v30, %v29
    %vm32 = vcmp.lt.s32.totalorder %v31, 2
    %v33 = vld [vmem:[#allocation2] sm:$0x3]
    %v34 = vsel %vm32, 1, 0
    %vm35 = vcmp.eq.s32.totalorder %v34, 1
    %v36 = vsel %vm35, %v33, 0.0
    %vm37 = vcmask 1041408
    %v38 = vsel %vm37, %v36, 0.0
    %v39 = vrot.slane %v38, 4
    %v40 = vadd.f32 %v38, %v39
    %v41 = vrot.slane %v40, 2
    %v42 = vadd.f32 %v40, %v41
    %v43 = vrot.slane %v42, 1
    %v44 = vadd.f32 %v42, %v43
    %v45 = vmul.f32 %v36, %v36
    %v46 = vsel %vm37, %v45, 0.0
    %v47 = vrot.slane %v46, 4
    %v48 = vadd.f32 %v46, %v47
    %v49 = vrot.slane %v48, 2
    %v50 = vadd.f32 %v48, %v49
    %v51 = vrot.slane %v50, 1
    %v52 = vadd.f32 %v50, %v51
    %v53 = vld [vmem:[#allocation5] sm:$0x3]
    %vm54 = vcmask 1040384
    %v55 = vsel %vm54, %v44, %v52
    %v56 = vadd.f32 %v53, %v55
    %57 = vst [vmem:[#allocation5] sm:$0x3] %v56
    // Predicated region
    $region14: #{tpu_custom_call.1} parent=1 // pred_check
      _
    $region15: #{tpu_custom_call.1} parent=1 // pred_check_branch
      %59 = sbr.rel (0) target = $region17
    $region16: #{tpu_custom_call.1} parent=1 // pred_region
      %s61 = ssub.s32 32, 32
      %62 = vsyncadd [#allocation4], %s61
      %s64 = sshll.u32 [#allocation5], 4
      %s65 = int_to_ptr.vmem [resolvable:$true] %s64
      %67 = dma.vmem_to_hbm [thread:$0]  %s65, 32, %s1, [#allocation4]
    $region17: #{tpu_custom_call.1} parent=1 // pred_fallthru
      _
    // Predicated region
    $region18: #{tpu_custom_call.1} parent=1 // pred_check
      _
    $region19: #{tpu_custom_call.1} parent=1 // pred_check_branch
      %69 = sbr.rel (0) target = $region21
    $region20: #{tpu_custom_call.1} parent=1 // pred_region
      %70 = dma.done [#allocation4], 32
    $region21: #{tpu_custom_call.1} parent=1 // pred_fallthru
      _
    %71 = vsyncpa [#allocation3], 1
    %72 = vsyncpa [#allocation4], 1

</llo_original>
